<compile_context>
chip_gen: v7x
topology: tpu7x:2x2x1
jax: 0.10.0
libtpu: 0.0.40
codegen_flags: <defaults>
</compile_context>

<pallas_src>
import functools

import jax
import jax.numpy as jnp
from jax import lax
from jax.experimental import pallas as pl
from jax.experimental.pallas import tpu as pltpu


def _bcr_kernel(x_ref, a_ref, cm_ref, b_ref, o_ref, pad_ref, *,
                KH, H, W, Cin, H_out, out_lane, pad, stride,
                B_blk, use_bn, use_relu):
    """One grid step: B_blk images.

    x_ref:   (B_blk, H, W*Cin)         lane-dense input (channels folded into lanes)
    a_ref:   (KH, W*Cin, W_out*Cout)   block-Toeplitz conv weight (kw + col-pad folded in)
    cm_ref:  (W*Cin, W*Cin)            channel-match matrix / (H*W) for the BN mean
    b_ref:   (1, W_out*Cout)           bias broadcast along W_out
    o_ref:   (B_blk, H_out, W_out*Cout)
    pad_ref: (H + 2*pad, W*Cin)        row-padded image scratch (column pad lives in a_ref)
    """
    WCin = W * Cin
    Hp = H + 2 * pad

    # Halo: only top/bottom row strips need explicit zeros.  Once per grid
    # step, outside the per-image loop (interior is fully rewritten per image,
    # halo is never touched again).
    if pad > 0:
        pad_ref[0:pad, :] = jnp.zeros((pad, WCin), jnp.float32)
        pad_ref[pad + H:Hp, :] = jnp.zeros((pad, WCin), jnp.float32)

    for b in range(B_blk):            # B_blk is small (<= 8); see bcr_forward.
        x2 = x_ref[b].astype(jnp.float32)                      # (H, W*Cin)

        if use_bn:
            # My_Bn: x - per-channel spatial mean.
            # cm[i, j] = [i % Cin == j % Cin] / (H*W), so sum_h(x2 @ cm) is the
            # per-channel mean broadcast back onto every lane.
            s = jnp.dot(x2, cm_ref[...], preferred_element_type=jnp.float32)
            x2 = x2 - jnp.sum(s, axis=0, keepdims=True)

        pad_ref[pl.ds(pad, H), :] = x2                         # full-width row slab

        # Conv2d + bias: KH accumulating lane-contraction matmuls on the MXU.
        acc = None
        for kh in range(KH):
            if stride == 1:
                rows = pad_ref[pl.ds(kh, H_out), :]
            else:
                rows = pad_ref[pl.ds(kh, H_out, stride=stride), :]
            part = jnp.dot(rows, a_ref[kh], preferred_element_type=jnp.float32)
            acc = part if acc is None else acc + part

        out = acc + b_ref[...]                                 # (H_out, out_lane)
        if use_relu:
            out = jnp.maximum(out, 0.0)
        o_ref[b] = out.astype(o_ref.dtype)                     # lane-dense store


def bcr_forward(x_nchw, weight_hwio, bias, *, stride=1, padding=0,
                relu=True, bn=False, group=1, batch_block=1):
    """BCR forward.  x_nchw: (N, Cin, H, W) -> (N, Cout, H_out, W_out)."""
    assert stride > 0, "ConvTranspose2d branch (stride<=0) not implemented"
    assert group == 1, "grouped conv not implemented"
    N, Cin, H, W = x_nchw.shape
    KH, KW, Cin_w, Cout = weight_hwio.shape
    assert Cin_w == Cin
    assert N % batch_block == 0 and 1 <= batch_block <= 8
    H_out = (H + 2 * padding - KH) // stride + 1
    W_out = (W + 2 * padding - KW) // stride + 1
    WCin = W * Cin
    out_lane = W_out * Cout

    # Lane-dense activations: channel folded into the minor dim.
    x2d = jnp.transpose(x_nchw, (0, 2, 3, 1)).reshape(N, H, WCin)
    x2d = x2d.astype(jnp.float32)

    # Block-Toeplitz conv weight:
    #   A[kh, w_in*Cin + c, wo*Cout + co] = w[kh, kw, c, co]
    #   with w_in = wo*stride + kw - padding, out-of-range taps dropped.
    w_f32 = weight_hwio.astype(jnp.float32)
    kw_i = jnp.arange(KW).reshape(KW, 1, 1)
    win_i = jnp.arange(W).reshape(1, W, 1)
    wo_i = jnp.arange(W_out).reshape(1, 1, W_out)
    tap = (win_i == wo_i * stride + kw_i - padding).astype(jnp.float32)  # (KW, W, W_out)
    A = jnp.einsum('kio,gkcd->gicod', tap, w_f32,
                   precision=lax.Precision.HIGHEST)         # (KH, W, Cin, W_out, Cout)
    A = A.reshape(KH, WCin, out_lane)

    # Channel-match matrix for the BN per-channel spatial mean.
    ch = jnp.arange(WCin) % Cin
    cm = (ch[:, None] == ch[None, :]).astype(jnp.float32) / float(H * W)

    bias_row = jnp.tile(bias.astype(jnp.float32), W_out).reshape(1, out_lane)

    kernel = functools.partial(
        _bcr_kernel, KH=KH, H=H, W=W, Cin=Cin, H_out=H_out,
        out_lane=out_lane, pad=padding, stride=stride,
        B_blk=batch_block, use_bn=bn, use_relu=relu)

    # Explicit VMEM budget: double-buffered pipeline blocks + scratch, with headroom.
    vmem_bytes = 4 * (2 * batch_block * H * WCin              # x blocks
                      + 2 * KH * WCin * out_lane              # A
                      + 2 * WCin * WCin                       # cm
                      + 2 * out_lane                          # bias
                      + 2 * batch_block * H_out * out_lane    # out blocks
                      + (H + 2 * padding) * WCin)             # pad scratch
    vmem_limit = int(min(100 * 1024 * 1024, max(4 * vmem_bytes, 8 * 1024 * 1024)))

    flops = 2 * N * KH * H_out * WCin * out_lane
    if bn:
        flops += 2 * N * H * WCin * WCin
    cost = pl.CostEstimate(
        flops=int(flops), transcendentals=0,
        bytes_accessed=int(4 * (N * H * WCin + KH * WCin * out_lane
                                + WCin * WCin + out_lane
                                + N * H_out * out_lane)))

    out = pl.pallas_call(
        kernel,
        out_shape=jax.ShapeDtypeStruct((N, H_out, out_lane), jnp.float32),
        grid_spec=pltpu.PrefetchScalarGridSpec(
            num_scalar_prefetch=0,
            grid=(N // batch_block,),
            in_specs=[
                pl.BlockSpec((batch_block, H, WCin), lambda n: (n, 0, 0)),
                pl.BlockSpec((KH, WCin, out_lane), lambda n: (0, 0, 0)),
                pl.BlockSpec((WCin, WCin), lambda n: (0, 0)),
                pl.BlockSpec((1, out_lane), lambda n: (0, 0)),
            ],
            out_specs=pl.BlockSpec((batch_block, H_out, out_lane),
                                   lambda n: (n, 0, 0)),
            scratch_shapes=[
                pltpu.VMEM((H + 2 * padding, WCin), jnp.float32),
            ],
        ),
        compiler_params=pltpu.CompilerParams(
            dimension_semantics=("parallel",),
            vmem_limit_bytes=vmem_limit),
        cost_estimate=cost,
    )(x2d, A, cm, bias_row)

    # Single fused XLA epilogue: split lanes back into (W_out, Cout) and go NCHW.
    out_nhwc = out.reshape(N, H_out, W_out, Cout)
    return jnp.transpose(out_nhwc, (0, 3, 1, 2))


def bcr_reference(x_nchw, weight_hwio, bias, *, stride=1, padding=0,
                  relu=True, bn=False):
    """Pure-JAX reference (mirrors PyTorch BCR forward)."""
    x = jnp.transpose(x_nchw, (0, 2, 3, 1)).astype(jnp.float32)   # NHWC
    if bn:
        x = x - jnp.mean(x, axis=(1, 2), keepdims=True)
    y = lax.conv_general_dilated(
        x, weight_hwio.astype(jnp.float32),
        window_strides=(stride, stride),
        padding=[(padding, padding), (padding, padding)],
        dimension_numbers=("NHWC", "HWIO", "NHWC"),
        precision=lax.Precision.HIGHEST)
    y = y + bias.reshape(1, 1, 1, -1)
    if relu:
        y = jnp.maximum(y, 0.0)
    return jnp.transpose(y, (0, 3, 1, 2))


if __name__ == "__main__":
    # BCR(kernel=3, cin=4, cout=8, stride=1, RELU=True, padding=1, BN=True)
    N, Cin, H, W = 2, 4, 16, 16
    KH = KW = 3
    Cout = 8
    padding = 1
    stride = 1

    key = jax.random.PRNGKey(0)
    kx, kw_key, kb = jax.random.split(key, 3)
    x = jax.random.normal(kx, (N, Cin, H, W), dtype=jnp.float32)
    # Conv2d weight (Cout, Cin, KH, KW) -> HWIO.
    w_oihw = jax.random.normal(kw_key, (Cout, Cin, KH, KW), dtype=jnp.float32) * 0.1
    w_hwio = jnp.transpose(w_oihw, (2, 3, 1, 0))
    bias = jax.random.normal(kb, (Cout,), dtype=jnp.float32) * 0.1

    ref = bcr_reference(x, w_hwio, bias, stride=stride, padding=padding,
                        relu=True, bn=True)

    # batch_block=1 keeps grid = N = 2 (one step per TensorCore on v7x);
    # batch_block=2 additionally checks the multi-image-per-step path.
    for bb in (1, 2):
        out = bcr_forward(x, w_hwio, bias, stride=stride, padding=padding,
                          relu=True, bn=True, batch_block=bb)
        out = jax.block_until_ready(out)
        assert out.shape == (N, Cout, H, W), out.shape
        err = float(jnp.max(jnp.abs(out - ref)))
        assert err < 2e-3, (bb, err)

    print("KERNEL_OK")
</pallas_src>

<mosaic_0001>
module attributes {stable_mosaic.version = 11 : i64} {
  func.func @_bcr_kernel(%arg0: i32, %arg1: memref<1x16x64xf32, #tpu.memory_space<vmem>>, %arg2: memref<3x64x128xf32, #tpu.memory_space<vmem>>, %arg3: memref<64x64xf32, #tpu.memory_space<vmem>>, %arg4: memref<1x128xf32, #tpu.memory_space<vmem>>, %arg5: memref<1x16x128xf32, #tpu.memory_space<vmem>>, %arg6: memref<18x64xf32, #tpu.memory_space<vmem>>) attributes {dimension_semantics = [#tpu.dimension_semantics<parallel>], iteration_bounds = array<i64: 2>, scalar_prefetch = 0 : i64, scratch_operands = 1 : i64, tpu.core_type = #tpu.core_type<tc>, window_params = [{transform_indices = @transform_0, window_bounds = array<i64: 1, 16, 64>}, {pipeline_mode = #tpu.pipeline_mode<synchronous>, transform_indices = @transform_1, window_bounds = array<i64: 3, 64, 128>}, {pipeline_mode = #tpu.pipeline_mode<synchronous>, transform_indices = @transform_2, window_bounds = array<i64: 64, 64>}, {pipeline_mode = #tpu.pipeline_mode<synchronous>, transform_indices = @transform_3, window_bounds = array<i64: 1, 128>}, {transform_indices = @transform_4, window_bounds = array<i64: 1, 16, 128>}]} {
    %cst = arith.constant 0.000000e+00 : f32
    %0 = vector.broadcast %cst : f32 to vector<1x64xf32>
    %c0 = arith.constant 0 : index
    %c0_0 = arith.constant 0 : index
    %1 = vector.load %arg6[%c0, %c0_0] : memref<18x64xf32, #tpu.memory_space<vmem>>, vector<1x64xf32>
    tpu.vector_store %arg6[%c0, %c0_0], %0 {strides = array<i32>} : memref<18x64xf32, #tpu.memory_space<vmem>>, vector<1x64xf32>,
    %cst_1 = arith.constant 0.000000e+00 : f32
    %2 = vector.broadcast %cst_1 : f32 to vector<1x64xf32>
    %c17 = arith.constant 17 : index
    %c0_2 = arith.constant 0 : index
    %3 = vector.load %arg6[%c17, %c0_2] : memref<18x64xf32, #tpu.memory_space<vmem>>, vector<1x64xf32>
    tpu.vector_store %arg6[%c17, %c0_2], %2 {strides = array<i32>} : memref<18x64xf32, #tpu.memory_space<vmem>>, vector<1x64xf32>,
    %c0_3 = arith.constant 0 : index
    %c0_4 = arith.constant 0 : index
    %c0_5 = arith.constant 0 : index
    %4 = vector.load %arg1[%c0_3, %c0_4, %c0_5] : memref<1x16x64xf32, #tpu.memory_space<vmem>>, vector<1x16x64xf32>
    %5 = vector.shape_cast %4 : vector<1x16x64xf32> to vector<16x64xf32>
    %c0_6 = arith.constant 0 : index
    %c0_7 = arith.constant 0 : index
    %6 = vector.load %arg3[%c0_6, %c0_7] : memref<64x64xf32, #tpu.memory_space<vmem>>, vector<64x64xf32>
    %cst_8 = arith.constant dense<0.000000e+00> : vector<16x64xf32>
    %7 = tpu.matmul %5, %6, %cst_8 {dimension_numbers = #tpu.dot_dimension_numbers<[1], [0], [0], [1], [0, 0, 1, 1], [], []>} : vector<16x64xf32>, vector<64x64xf32>, vector<16x64xf32> -> vector<16x64xf32>
    %cst_9 = arith.constant dense<0.000000e+00> : vector<64xf32>
    %8 = vector.multi_reduction <add>, %7, %cst_9 [0] : vector<16x64xf32> to vector<64xf32>
    %9 = vector.shape_cast %8 : vector<64xf32> to vector<1x64xf32>
    %10 = vector.broadcast %9 : vector<1x64xf32> to vector<16x64xf32>
    %11 = arith.subf %5, %10 : vector<16x64xf32>
    %c1 = arith.constant 1 : index
    %c0_10 = arith.constant 0 : index
    %12 = vector.load %arg6[%c1, %c0_10] : memref<18x64xf32, #tpu.memory_space<vmem>>, vector<16x64xf32>
    tpu.vector_store %arg6[%c1, %c0_10], %11 {strides = array<i32>} : memref<18x64xf32, #tpu.memory_space<vmem>>, vector<16x64xf32>,
    %c0_11 = arith.constant 0 : index
    %c0_12 = arith.constant 0 : index
    %13 = vector.load %arg6[%c0_11, %c0_12] : memref<18x64xf32, #tpu.memory_space<vmem>>, vector<16x64xf32>
    %c0_13 = arith.constant 0 : index
    %c0_14 = arith.constant 0 : index
    %c0_15 = arith.constant 0 : index
    %14 = vector.load %arg2[%c0_13, %c0_14, %c0_15] : memref<3x64x128xf32, #tpu.memory_space<vmem>>, vector<1x64x128xf32>
    %15 = vector.shape_cast %14 : vector<1x64x128xf32> to vector<64x128xf32>
    %cst_16 = arith.constant dense<0.000000e+00> : vector<16x128xf32>
    %16 = tpu.matmul %13, %15, %cst_16 {dimension_numbers = #tpu.dot_dimension_numbers<[1], [0], [0], [1], [0, 0, 1, 1], [], []>} : vector<16x64xf32>, vector<64x128xf32>, vector<16x128xf32> -> vector<16x128xf32>
    %c1_17 = arith.constant 1 : index
    %c0_18 = arith.constant 0 : index
    %17 = vector.load %arg6[%c1_17, %c0_18] : memref<18x64xf32, #tpu.memory_space<vmem>>, vector<16x64xf32>
    %c1_19 = arith.constant 1 : index
    %c0_20 = arith.constant 0 : index
    %c0_21 = arith.constant 0 : index
    %18 = vector.load %arg2[%c1_19, %c0_20, %c0_21] : memref<3x64x128xf32, #tpu.memory_space<vmem>>, vector<1x64x128xf32>
    %19 = vector.shape_cast %18 : vector<1x64x128xf32> to vector<64x128xf32>
    %cst_22 = arith.constant dense<0.000000e+00> : vector<16x128xf32>
    %20 = tpu.matmul %17, %19, %cst_22 {dimension_numbers = #tpu.dot_dimension_numbers<[1], [0], [0], [1], [0, 0, 1, 1], [], []>} : vector<16x64xf32>, vector<64x128xf32>, vector<16x128xf32> -> vector<16x128xf32>
    %21 = arith.addf %16, %20 : vector<16x128xf32>
    %c2 = arith.constant 2 : index
    %c0_23 = arith.constant 0 : index
    %22 = vector.load %arg6[%c2, %c0_23] : memref<18x64xf32, #tpu.memory_space<vmem>>, vector<16x64xf32>
    %c2_24 = arith.constant 2 : index
    %c0_25 = arith.constant 0 : index
    %c0_26 = arith.constant 0 : index
    %23 = vector.load %arg2[%c2_24, %c0_25, %c0_26] : memref<3x64x128xf32, #tpu.memory_space<vmem>>, vector<1x64x128xf32>
    %24 = vector.shape_cast %23 : vector<1x64x128xf32> to vector<64x128xf32>
    %cst_27 = arith.constant dense<0.000000e+00> : vector<16x128xf32>
    %25 = tpu.matmul %22, %24, %cst_27 {dimension_numbers = #tpu.dot_dimension_numbers<[1], [0], [0], [1], [0, 0, 1, 1], [], []>} : vector<16x64xf32>, vector<64x128xf32>, vector<16x128xf32> -> vector<16x128xf32>
    %26 = arith.addf %21, %25 : vector<16x128xf32>
    %c0_28 = arith.constant 0 : index
    %c0_29 = arith.constant 0 : index
    %27 = vector.load %arg4[%c0_28, %c0_29] : memref<1x128xf32, #tpu.memory_space<vmem>>, vector<1x128xf32>
    %28 = vector.broadcast %27 : vector<1x128xf32> to vector<16x128xf32>
    %29 = arith.addf %26, %28 : vector<16x128xf32>
    %cst_30 = arith.constant 0.000000e+00 : f32
    %30 = vector.broadcast %cst_30 : f32 to vector<16x128xf32>
    %31 = arith.maximumf %29, %30 : vector<16x128xf32>
    %c0_31 = arith.constant 0 : index
    %c0_32 = arith.constant 0 : index
    %c0_33 = arith.constant 0 : index
    %32 = vector.load %arg5[%c0_31, %c0_32, %c0_33] : memref<1x16x128xf32, #tpu.memory_space<vmem>>, vector<1x16x128xf32>
    %33 = vector.shape_cast %32 : vector<1x16x128xf32> to vector<16x128xf32>
    %34 = vector.shape_cast %31 : vector<16x128xf32> to vector<1x16x128xf32>
    tpu.vector_store %arg5[%c0_31, %c0_32, %c0_33], %34 {strides = array<i32>} : memref<1x16x128xf32, #tpu.memory_space<vmem>>, vector<1x16x128xf32>,
    return
  }
  func.func @transform_0(%arg0: i32) -> (i32, i32, i32) {
    %c0_i32 = arith.constant 0 : i32
    %c0_i32_0 = arith.constant 0 : i32
    %c0_i32_1 = arith.constant 0 : i32
    return %arg0, %c0_i32, %c0_i32_0 : i32, i32, i32
  }
  func.func @transform_1(%arg0: i32) -> (i32, i32, i32) {
    %c0_i32 = arith.constant 0 : i32
    %c0_i32_0 = arith.constant 0 : i32
    %c0_i32_1 = arith.constant 0 : i32
    %c0_i32_2 = arith.constant 0 : i32
    return %c0_i32, %c0_i32_0, %c0_i32_1 : i32, i32, i32
  }
  func.func @transform_2(%arg0: i32) -> (i32, i32) {
    %c0_i32 = arith.constant 0 : i32
    %c0_i32_0 = arith.constant 0 : i32
    %c0_i32_1 = arith.constant 0 : i32
    return %c0_i32, %c0_i32_0 : i32, i32
  }
  func.func @transform_3(%arg0: i32) -> (i32, i32) {
    %c0_i32 = arith.constant 0 : i32
    %c0_i32_0 = arith.constant 0 : i32
    %c0_i32_1 = arith.constant 0 : i32
    return %c0_i32, %c0_i32_0 : i32, i32
  }
  func.func @transform_4(%arg0: i32) -> (i32, i32, i32) {
    %c0_i32 = arith.constant 0 : i32
    %c0_i32_0 = arith.constant 0 : i32
    %c0_i32_1 = arith.constant 0 : i32
    return %arg0, %c0_i32, %c0_i32_0 : i32, i32, i32
  }
}

</mosaic_0001>

<llo_original>
// kernel: tpu_custom_call.1
$region0: #{tpu_custom_call.1}
  #allocation0 [shape = 'u32[]', space=smem, size = 0x4, offset = 0x4, fixed_abs, tag = 'smem constant byte address 0x4 - core index']
  #allocation1 [shape = 'u32[144,128]{1,0:T(1,128)}', space=vmem, size = 0x12000, scoped, tag = 'internal scratch']
  #allocation2 [shape = 'f32[18,64]{1,0:T(8,128)}', space=vmem, size = 0x3000, scoped, tag = 'scratch operand']
  %s0 = inlined_call_operand.hbm [shape: f32[2,16,64], index: 0, kind: input, shape index: {}]
  %s1 = inlined_call_operand.hbm [shape: f32[3,64,128], index: 1, kind: input, shape index: {}]
  %s2 = inlined_call_operand.hbm [shape: f32[64,64], index: 2, kind: input, shape index: {}]
  %s3 = inlined_call_operand.vmem [shape: f32[1,128], index: 3, kind: input, shape index: {}]
  %s4 = inlined_call_operand.hbm [shape: f32[2,16,128], index: 4, kind: output, shape index: {}]
  %s5 = sld [smem:[#allocation0]]
  $region61: #{tpu_custom_call.1} parent=0
    _
  %s7 = ssub.s32 1, %s5
  %s8 = scalar_select 0, %s7, %s5
  $region1: #{tpu_custom_call.1} parent=0
    #allocation3 [shape = 'u8[16384]{0}', space=vmem, size = 0x4000, scoped, tag = 'input window, operand 0']
    #allocation4 [shape = 's32[2]{0}', space=sflag, size = 0x8, scoped, tag = 'scoped memory for tpu_custom_call.1']
    #allocation5 [shape = 's32[2]{0}', space=sflag, size = 0x8, scoped, tag = 'scoped memory for tpu_custom_call.1']
    #allocation6 [shape = 'u8[98304]{0}', space=vmem, size = 0x18000, scoped, tag = 'input window, operand 1, single buffered']
    #allocation7 [shape = 's32[1]{0}', space=sflag, size = 0x4, scoped, tag = 'scoped memory for tpu_custom_call.1']
    #allocation8 [shape = 'u8[32768]{0}', space=vmem, size = 0x8000, scoped, tag = 'input window, operand 2, single buffered']
    #allocation9 [shape = 'u8[16384]{0}', space=vmem, size = 0x4000, scoped, tag = 'output window, operand 0']
    %9 = vsyncpa [#allocation4], 0
    %s10 = scalar_lea.sflag [#allocation4], 1
    %11 = vsyncpa %s10, 0
    %12 = vsyncpa [#allocation7], 0
    %13 = vsyncpa [#allocation5], 0
    %s14 = scalar_lea.sflag [#allocation5], 1
    %15 = vsyncpa %s14, 0
    loop: start=0, step=1, limit=4
    $region2: #{tpu_custom_call.1} parent=1 // loop_pre_header
      _
    $region3: #{tpu_custom_call.1} parent=1 // loop_header
      %s17 = sphi 0, %s21
      %p18 = scmp.ge.s32.totalorder %s17, 4
      %s27 = sphi 0, %s29
      %s30 = sphi 0, %s27
      %s31 = sphi 0, %s30
      %s47 = sphi 0, %s31
      %s51 = sphi 0, %s51
      %s53 = sphi 0, %s51
      %s54 = sphi 0, %s53
      %s68 = sphi 0, %s54
      %s72 = sphi 0, %s72
      %s74 = sphi 0, %s72
      %s75 = sphi 0, %s74
      %s89 = sphi 0, %s75
      %s93 = sphi 0, %s93
      %s95 = sphi 0, %s93
      %s96 = sphi 0, %s95
      %s110 = sphi 0, %s96
      %s116 = sphi 0, %s118
      %s119 = sphi 0, %s116
      %s120 = sphi 0, %s119
      %s136 = sphi 0, %s120
    $region4: #{tpu_custom_call.1} parent=1 // loop_header_branch
      %20 = sbr.rel (%p18) target = $region8
    $region5: #{tpu_custom_call.1} parent=1 // loop_body
      %s22 = ssub.s32 %s17, 1
      %s23 = ssub.s32 %s17, 2
      %s24 = sadd.s32 %s17, 1
      %s25 = ssub.s32 %s17, %s24
      %p26 = scmp.eq.s32.totalorder %s25, 0
      %s28 = sadd.s32 %s27, 1
      %s29 = scalar_select %p26, %s27, %s28
      %p32 = pneg %p26
      %p33 = scmp.eq.s32.totalorder %s17, 1
      %p34 = por %p32, %p33
      %p35 = scmp.ne.s32.totalorder %s27, %s30
      %p36 = scmp.eq.s32.totalorder %s17, 0
      %p37 = por %p35, %p36
      %p38 = scmp.ne.s32.totalorder %s27, %s30
      %p39 = scmp.eq.s32.totalorder %s22, 1
      %p40 = por %p38, %p39
      %p41 = scmp.ne.s32.totalorder %s30, %s31
      %p42 = scmp.eq.s32.totalorder %s22, 0
      %p43 = por %p41, %p42
      %p44 = scmp.ne.s32.totalorder %s30, %s31
      %p45 = scmp.eq.s32.totalorder %s23, 1
      %p46 = por %p44, %p45
      %p48 = scmp.ne.s32.totalorder %s31, %s47
      %p49 = scmp.eq.s32.totalorder %s23, 0
      %p50 = por %p48, %p49
      %s52 = sadd.s32 %s51, 1
      %p55 = scmp.eq.s32.totalorder %s17, 1
      %p56 = scmp.ne.s32.totalorder %s51, %s53
      %p57 = scmp.eq.s32.totalorder %s17, 0
      %p58 = por %p56, %p57
      %p59 = scmp.ne.s32.totalorder %s51, %s53
      %p60 = scmp.eq.s32.totalorder %s22, 1
      %p61 = por %p59, %p60
      %p62 = scmp.ne.s32.totalorder %s53, %s54
      %p63 = scmp.eq.s32.totalorder %s22, 0
      %p64 = por %p62, %p63
      %p65 = scmp.ne.s32.totalorder %s53, %s54
      %p66 = scmp.eq.s32.totalorder %s23, 1
      %p67 = por %p65, %p66
      %p69 = scmp.ne.s32.totalorder %s54, %s68
      %p70 = scmp.eq.s32.totalorder %s23, 0
      %p71 = por %p69, %p70
      %s73 = sadd.s32 %s72, 1
      %p76 = scmp.eq.s32.totalorder %s17, 1
      %p77 = scmp.ne.s32.totalorder %s72, %s74
      %p78 = scmp.eq.s32.totalorder %s17, 0
      %p79 = por %p77, %p78
      %p80 = scmp.ne.s32.totalorder %s72, %s74
      %p81 = scmp.eq.s32.totalorder %s22, 1
      %p82 = por %p80, %p81
      %p83 = scmp.ne.s32.totalorder %s74, %s75
      %p84 = scmp.eq.s32.totalorder %s22, 0
      %p85 = por %p83, %p84
      %p86 = scmp.ne.s32.totalorder %s74, %s75
      %p87 = scmp.eq.s32.totalorder %s23, 1
      %p88 = por %p86, %p87
      %p90 = scmp.ne.s32.totalorder %s75, %s89
      %p91 = scmp.eq.s32.totalorder %s23, 0
      %p92 = por %p90, %p91
      %s94 = sadd.s32 %s93, 1
      %p97 = scmp.eq.s32.totalorder %s17, 1
      %p98 = scmp.ne.s32.totalorder %s93, %s95
      %p99 = scmp.eq.s32.totalorder %s17, 0
      %p100 = por %p98, %p99
      %p101 = scmp.ne.s32.totalorder %s93, %s95
      %p102 = scmp.eq.s32.totalorder %s22, 1
      %p103 = por %p101, %p102
      %p104 = scmp.ne.s32.totalorder %s95, %s96
      %p105 = scmp.eq.s32.totalorder %s22, 0
      %p106 = por %p104, %p105
      %p107 = scmp.ne.s32.totalorder %s95, %s96
      %p108 = scmp.eq.s32.totalorder %s23, 1
      %p109 = por %p107, %p108
      %p111 = scmp.ne.s32.totalorder %s96, %s110
      %p112 = scmp.eq.s32.totalorder %s23, 0
      %p113 = por %p111, %p112
      %s114 = ssub.s32 %s17, %s24
      %p115 = scmp.eq.s32.totalorder %s114, 0
      %s117 = sadd.s32 %s116, 1
      %s118 = scalar_select %p115, %s116, %s117
      %p121 = pneg %p115
      %p122 = scmp.eq.s32.totalorder %s17, 1
      %p123 = por %p121, %p122
      %p124 = scmp.ne.s32.totalorder %s116, %s119
      %p125 = scmp.eq.s32.totalorder %s17, 0
      %p126 = por %p124, %p125
      %p127 = scmp.ne.s32.totalorder %s116, %s119
      %p128 = scmp.eq.s32.totalorder %s22, 1
      %p129 = por %p127, %p128
      %p130 = scmp.ne.s32.totalorder %s119, %s120
      %p131 = scmp.eq.s32.totalorder %s22, 0
      %p132 = por %p130, %p131
      %p133 = scmp.ne.s32.totalorder %s119, %s120
      %p134 = scmp.eq.s32.totalorder %s23, 1
      %p135 = por %p133, %p134
      %p137 = scmp.ne.s32.totalorder %s120, %s136
      %p138 = scmp.eq.s32.totalorder %s23, 0
      %p139 = por %p137, %p138
      %p140 = scmp.le.s32.totalorder 1, %s17
      %p141 = scmp.lt.s32.totalorder %s17, 3
      %p142 = pnand %p140, %p141
      %p143 = pneg %p142
      // Predicated region
      $region9: #{tpu_custom_call.1} parent=5 // pred_check
        _
      $region10: #{tpu_custom_call.1} parent=5 // pred_check_branch
        %145 = sbr.rel (%p142) target = $region12
      $region11: #{tpu_custom_call.1} parent=5 // pred_region
        %s146 = ssub.s32 %s17, 1
        // Predicated region
        $region13: #{tpu_custom_call.1} parent=11 // pred_check
          %p147 = pneg %p64
        $region14: #{tpu_custom_call.1} parent=11 // pred_check_branch
          %149 = sbr.rel (%p147) target = $region16
        $region15: #{tpu_custom_call.1} parent=11 // pred_region
          %s151 = ssub.s32 3072, 3072
          %152 = vsyncadd [#allocation7], %s151
          %s153 = sshll.u32 [#allocation6], 4
          %s154 = int_to_ptr.vmem [resolvable:$true] %s153
          %159 = dma.hbm_to_vmem [thread:$0]  %s1, 3072, %s154, [#allocation7], 128, 128, 8
        $region16: #{tpu_custom_call.1} parent=11 // pred_fallthru
          _
        // Predicated region
        $region17: #{tpu_custom_call.1} parent=11 // pred_check
          %p160 = pneg %p85
        $region18: #{tpu_custom_call.1} parent=11 // pred_check_branch
          %162 = sbr.rel (%p160) target = $region20
        $region19: #{tpu_custom_call.1} parent=11 // pred_region
          %s164 = ssub.s32 1024, 1024
          %165 = vsyncadd [#allocation7], %s164
          %s166 = sshll.u32 [#allocation8], 4
          %s167 = int_to_ptr.vmem [resolvable:$true] %s166
          %172 = dma.hbm_to_vmem [thread:$0]  %s2, 1024, %s167, [#allocation7], 128, 128, 8
        $region20: #{tpu_custom_call.1} parent=11 // pred_fallthru
          _
        // Predicated region
        $region21: #{tpu_custom_call.1} parent=11 // pred_check
          %p173 = pneg %p106
        $region22: #{tpu_custom_call.1} parent=11 // pred_check_branch
          %175 = sbr.rel (%p173) target = $region24
        $region23: #{tpu_custom_call.1} parent=11 // pred_region
          _
        $region24: #{tpu_custom_call.1} parent=11 // pred_fallthru
          _
      $region12: #{tpu_custom_call.1} parent=5 // pred_fallthru
        _
      %p176 = scmp.lt.s32.totalorder %s17, 2
      // Predicated region
      $region25: #{tpu_custom_call.1} parent=5 // pred_check
        %p177 = pneg %p176
      $region26: #{tpu_custom_call.1} parent=5 // pred_check_branch
        %179 = sbr.rel (%p177) target = $region28
      $region27: #{tpu_custom_call.1} parent=5 // pred_region
        // Predicated region
        $region29: #{tpu_custom_call.1} parent=27 // pred_check
          %p180 = pneg %p37
        $region30: #{tpu_custom_call.1} parent=27 // pred_check_branch
          %182 = sbr.rel (%p180) target = $region32
        $region31: #{tpu_custom_call.1} parent=27 // pred_region
          %s183 = sand.u32 %s27, 1
          %s184 = scalar_lea.sflag [#allocation4], %s183
          %s185 = sand.u32 %s27, 1
          %s186 = smul.addr %s185, 16
          %s187 = scalar_lea.vmem [#allocation3], %s186
          %s189 = ssub.s32 256, 256
          %190 = vsyncadd %s184, %s189
          %s191 = smul.addr %s17, 2
          %s192 = smul.addr %s191, 128
          %s193 = scalar_lea.hbm %s0, %s192
          %s194 = sshll.u32 %s187, 4
          %s195 = int_to_ptr.vmem [resolvable:$true] %s194
          %200 = dma.hbm_to_vmem [thread:$0]  %s193, 256, %s195, %s184, 128, 128, 8
        $region32: #{tpu_custom_call.1} parent=27 // pred_fallthru
          _
      $region28: #{tpu_custom_call.1} parent=5 // pred_fallthru
        _
      %p201 = scmp.le.s32.totalorder 1, %s17
      %p202 = scmp.lt.s32.totalorder %s17, 3
      %p203 = pnand %p201, %p202
      %p204 = pneg %p203
      // Predicated region
      $region33: #{tpu_custom_call.1} parent=5 // pred_check
        _
      $region34: #{tpu_custom_call.1} parent=5 // pred_check_branch
        %206 = sbr.rel (%p203) target = $region36
      $region35: #{tpu_custom_call.1} parent=5 // pred_region
        %s207 = ssub.s32 %s17, 1
        %s208 = sand.u32 %s30, 1
        %s209 = scalar_lea.sflag [#allocation4], %s208
        %s210 = sand.u32 %s30, 1
        %s211 = smul.addr %s210, 16
        %s212 = scalar_lea.vmem [#allocation3], %s211
        // Predicated region
        $region37: #{tpu_custom_call.1} parent=35 // pred_check
          %p213 = pneg %p43
        $region38: #{tpu_custom_call.1} parent=35 // pred_check_branch
          %215 = sbr.rel (%p213) target = $region40
        $region39: #{tpu_custom_call.1} parent=35 // pred_region
          %216 = dma.done %s209, 256
        $region40: #{tpu_custom_call.1} parent=35 // pred_fallthru
          _
        // Predicated region
        $region41: #{tpu_custom_call.1} parent=35 // pred_check
          %p217 = pneg %p64
        $region42: #{tpu_custom_call.1} parent=35 // pred_check_branch
          %219 = sbr.rel (%p217) target = $region44
        $region43: #{tpu_custom_call.1} parent=35 // pred_region
          %220 = dma.done [#allocation7], 3072
        $region44: #{tpu_custom_call.1} parent=35 // pred_fallthru
          _
        // Predicated region
        $region45: #{tpu_custom_call.1} parent=35 // pred_check
          %p221 = pneg %p85
        $region46: #{tpu_custom_call.1} parent=35 // pred_check_branch
          %223 = sbr.rel (%p221) target = $region48
        $region47: #{tpu_custom_call.1} parent=35 // pred_region
          %224 = dma.done [#allocation7], 1024
        $region48: #{tpu_custom_call.1} parent=35 // pred_fallthru
          _
        %s225 = sand.u32 %s30, 1
        %s226 = scalar_lea.sflag [#allocation4], %s225
        %s227 = sand.u32 %s30, 1
        %s228 = smul.addr %s227, 16
        %s229 = scalar_lea.vmem [#allocation3], %s228
        %p230 = pneg %p43
        %p231 = pneg %p40
        %p232 = pneg %p64
        %p233 = pneg %p61
        %p234 = pneg %p85
        %p235 = pneg %p82
        %p236 = pneg %p106
        %p237 = pneg %p103
        %p238 = pneg %p132
        %p239 = pneg %p129
        %s240 = sand.u32 %s119, 1
        %s241 = scalar_lea.sflag [#allocation5], %s240
        %s242 = sand.u32 %s119, 1
        %s243 = smul.addr %s242, 16
        %s244 = scalar_lea.vmem [#allocation9], %s243
        %vm245 = vcmask 516096
        %246 = vst.msk [vmem:[#allocation2] sm:$0x1] %vm245, 0.0
        %247 = vst.msk [vmem:[#allocation2 + $0x11] sm:$0x1] %vm245, 0.0
        %v248 = vld [vmem:[%s212] sm:$0xff]
        %v249 = vld [vmem:[%s212 + $0x8] sm:$0xff]
        %v250 = vld [vmem:[#allocation8] sm:$0xff]
        %v251 = vld [vmem:[#allocation8 + $0x8] sm:$0xff]
        %v252 = vld [vmem:[#allocation8 + $0x10] sm:$0xff]
        %v253 = vld [vmem:[#allocation8 + $0x18] sm:$0xff]
        %v254 = vld [vmem:[#allocation8 + $0x20] sm:$0xff]
        %v255 = vld [vmem:[#allocation8 + $0x28] sm:$0xff]
        %v256 = vld [vmem:[#allocation8 + $0x30] sm:$0xff]
        %v257 = vld [vmem:[#allocation8 + $0x38] sm:$0xff]
        %vm258 = vcmask 523264
        %v260 = vsel %vm258, %v248, 0
        %v263 = vsel %vm258, %v249, 0
        %265 = vmatprep.subr.mxu0 0.0
        %266 = vmatpush1.msra.mxu0 %v250
        %267 = vmatprep.subr.mxu0 0.0
        %268 = vmatpush1.msra.mxu0 %v251
        %269 = vmatprep.subr.mxu0 0.0
        %270 = vmatpush1.msra.mxu0 %v252
        %271 = vmatprep.subr.mxu0 0.0
        %272 = vmatpush1.msra.mxu0 %v253
        %273 = vmatprep.subr.mxu0 0.0
        %274 = vmatpush1.msra.mxu0 %v254
        %275 = vmatprep.subr.mxu0 0.0
        %276 = vmatpush1.msra.mxu0 %v255
        %277 = vmatprep.subr.mxu0 0.0
        %278 = vmatpush1.msra.mxu0 %v256
        %279 = vmatprep.subr.mxu0 0.0
        %280 = vmatpush1.msra.mxu0 %v257
        %281 = vmatprep.subr.mxu0 0.0
        %282 = vmatpush1.msra.mxu0 0.0
        %283 = vmatprep.subr.mxu0 0.0
        %284 = vmatpush1.msra.mxu0 0.0
        %285 = vmatprep.subr.mxu0 0.0
        %286 = vmatpush1.msra.mxu0 0.0
        %287 = vmatprep.subr.mxu0 0.0
        %288 = vmatpush1.msra.mxu0 0.0
        %289 = vmatprep.subr.mxu0 0.0
        %290 = vmatpush1.msra.mxu0 0.0
        %291 = vmatprep.subr.mxu0 0.0
        %292 = vmatpush1.msra.mxu0 0.0
        %293 = vmatprep.subr.mxu0 0.0
        %294 = vmatpush1.msra.mxu0 0.0
        %295 = vmatprep.subr.mxu0 0.0
        %296 = vmatpush1.msra.mxu0 0.0
        %297 = vmatprep.subr.mxu0 0.0
        %298 = vmatpush1.msra.mxu0 0.0
        %299 = vmatprep.subr.mxu0 0.0
        %300 = vmatpush1.msra.mxu0 0.0
        %301 = vmatprep.subr.mxu0 0.0
        %302 = vmatpush1.msra.mxu0 0.0
        %303 = vmatprep.subr.mxu0 0.0
        %304 = vmatpush1.msra.mxu0 0.0
        %305 = vmatprep.subr.mxu0 0.0
        %306 = vmatpush1.msra.mxu0 0.0
        %307 = vmatprep.subr.mxu0 0.0
        %308 = vmatpush1.msra.mxu0 0.0
        %309 = vmatprep.subr.mxu0 0.0
        %310 = vmatpush1.msra.mxu0 0.0
        %311 = vmatprep.subr.mxu0 0.0
        %312 = vmatpush1.msra.mxu0 0.0
        %313 = vmatprep.subr.mxu0 0.0
        %314 = vmatpush1.msra.mxu0 0.0
        %315 = vmatprep.subr.mxu0 0.0
        %316 = vmatpush1.msra.mxu0 0.0
        %317 = vmatprep.subr.mxu0 0.0
        %318 = vmatpush1.msra.mxu0 0.0
        %319 = vmatprep.subr.mxu0 0.0
        %320 = vmatpush1.msra.mxu0 0.0
        %321 = vmatprep.subr.mxu0 0.0
        %322 = vmatpush1.msra.mxu0 0.0
        %323 = vmatprep.subr.mxu0 0.0
        %324 = vmatpush1.msra.mxu0 0.0
        %325 = vmatprep.subr.mxu0 0.0
        %326 = vmatpush1.msra.mxu0 0.0
        %327 = vmatprep.subr.mxu0 0.0
        %328 = vmatpush1.msra.mxu0 0.0
        %329 = vmatprep.mubr.f32.mxu0 0.0
        %330 = vmatmul.mubr.f32.gmra.mrb[0].mxu0 %v260
        %v331 = vpop.f32.mrb[0].mxu0
        %v332 = vadd.f32 0.0, %v331
        %v333 = vpop.f32.mrb[0].mxu0
        %334 = vmatprep.mubr.f32.mxu0 0.0
        %335 = vmatmul.mubr.f32.gmra.mrb[0].mxu0 %v263
        %v336 = vpop.f32.mrb[0].mxu0
        %v337 = vadd.f32 0.0, %v336
        %v338 = vpop.f32.mrb[0].mxu0
        %339 = vdwg.mxu0
        %v340 = vsel %vm258, %v332, 0.0
        %v341 = vsel %vm258, %v337, 0.0
        %v342 = vadd.f32 %v340, %v341
        %v343 = vrot.slane %v342, 4
        %v344 = vadd.f32 %v342, %v343
        %v345 = vrot.slane %v344, 2
        %v346 = vadd.f32 %v344, %v345
        %v347 = vrot.slane %v346, 1
        %v348 = vadd.f32 %v346, %v347
        %v349 = vsub.f32 %v248, %v348
        %v350 = vsub.f32 %v249, %v348
        %351 = vst.msk [vmem:[#allocation2 + $0x1] sm:$0xff] %vm258, %v349
        %352 = vst.msk [vmem:[#allocation2 + $0x9] sm:$0xff] %vm258, %v350
        %v353 = vld [vmem:[#allocation2] sm:$0xff]
        %v354 = vld [vmem:[#allocation2 + $0x8] sm:$0xff]
        %v355 = vld [vmem:[#allocation6] sm:$0xff]
        %v356 = vld [vmem:[#allocation6 + $0x8] sm:$0xff]
        %v357 = vld [vmem:[#allocation6 + $0x10] sm:$0xff]
        %v358 = vld [vmem:[#allocation6 + $0x18] sm:$0xff]
        %v359 = vld [vmem:[#allocation6 + $0x20] sm:$0xff]
        %v360 = vld [vmem:[#allocation6 + $0x28] sm:$0xff]
        %v361 = vld [vmem:[#allocation6 + $0x30] sm:$0xff]
        %v362 = vld [vmem:[#allocation6 + $0x38] sm:$0xff]
        %v363 = vld [vmem:[#allocation2 + $0x1] sm:$0xff]
        %v364 = vld [vmem:[#allocation2 + $0x9] sm:$0xff]
        %s365 = scalar_lea.vmem [#allocation6], 64
        %v366 = vld [vmem:[%s365] sm:$0xff]
        %v367 = vld [vmem:[%s365 + $0x8] sm:$0xff]
        %v368 = vld [vmem:[%s365 + $0x10] sm:$0xff]
        %v369 = vld [vmem:[%s365 + $0x18] sm:$0xff]
        %v370 = vld [vmem:[%s365 + $0x20] sm:$0xff]
        %v371 = vld [vmem:[%s365 + $0x28] sm:$0xff]
        %v372 = vld [vmem:[%s365 + $0x30] sm:$0xff]
        %v373 = vld [vmem:[%s365 + $0x38] sm:$0xff]
        %v375 = vsel %vm258, %v363, 0
        %v378 = vsel %vm258, %v364, 0
        %380 = vmatprep.subr.mxu0 0.0
        %381 = vmatpush1.msra.mxu0 %v366
        %382 = vmatprep.subr.mxu0 0.0
        %383 = vmatpush1.msra.mxu0 %v367
        %384 = vmatprep.subr.mxu0 0.0
        %385 = vmatpush1.msra.mxu0 %v368
        %386 = vmatprep.subr.mxu0 0.0
        %387 = vmatpush1.msra.mxu0 %v369
        %388 = vmatprep.subr.mxu0 0.0
        %389 = vmatpush1.msra.mxu0 %v370
        %390 = vmatprep.subr.mxu0 0.0
        %391 = vmatpush1.msra.mxu0 %v371
        %392 = vmatprep.subr.mxu0 0.0
        %393 = vmatpush1.msra.mxu0 %v372
        %394 = vmatprep.subr.mxu0 0.0
        %395 = vmatpush1.msra.mxu0 %v373
        %396 = vmatprep.subr.mxu0 0.0
        %397 = vmatpush1.msra.mxu0 0.0
        %398 = vmatprep.subr.mxu0 0.0
        %399 = vmatpush1.msra.mxu0 0.0
        %400 = vmatprep.subr.mxu0 0.0
        %401 = vmatpush1.msra.mxu0 0.0
        %402 = vmatprep.subr.mxu0 0.0
        %403 = vmatpush1.msra.mxu0 0.0
        %404 = vmatprep.subr.mxu0 0.0
        %405 = vmatpush1.msra.mxu0 0.0
        %406 = vmatprep.subr.mxu0 0.0
        %407 = vmatpush1.msra.mxu0 0.0
        %408 = vmatprep.subr.mxu0 0.0
        %409 = vmatpush1.msra.mxu0 0.0
        %410 = vmatprep.subr.mxu0 0.0
        %411 = vmatpush1.msra.mxu0 0.0
        %412 = vmatprep.subr.mxu0 0.0
        %413 = vmatpush1.msra.mxu0 0.0
        %414 = vmatprep.subr.mxu0 0.0
        %415 = vmatpush1.msra.mxu0 0.0
        %416 = vmatprep.subr.mxu0 0.0
        %417 = vmatpush1.msra.mxu0 0.0
        %418 = vmatprep.subr.mxu0 0.0
        %419 = vmatpush1.msra.mxu0 0.0
        %420 = vmatprep.subr.mxu0 0.0
        %421 = vmatpush1.msra.mxu0 0.0
        %422 = vmatprep.subr.mxu0 0.0
        %423 = vmatpush1.msra.mxu0 0.0
        %424 = vmatprep.subr.mxu0 0.0
        %425 = vmatpush1.msra.mxu0 0.0
        %426 = vmatprep.subr.mxu0 0.0
        %427 = vmatpush1.msra.mxu0 0.0
        %428 = vmatprep.subr.mxu0 0.0
        %429 = vmatpush1.msra.mxu0 0.0
        %430 = vmatprep.subr.mxu0 0.0
        %431 = vmatpush1.msra.mxu0 0.0
        %432 = vmatprep.subr.mxu0 0.0
        %433 = vmatpush1.msra.mxu0 0.0
        %434 = vmatprep.subr.mxu0 0.0
        %435 = vmatpush1.msra.mxu0 0.0
        %436 = vmatprep.subr.mxu0 0.0
        %437 = vmatpush1.msra.mxu0 0.0
        %438 = vmatprep.subr.mxu0 0.0
        %439 = vmatpush1.msra.mxu0 0.0
        %440 = vmatprep.subr.mxu0 0.0
        %441 = vmatpush1.msra.mxu0 0.0
        %442 = vmatprep.subr.mxu0 0.0
        %443 = vmatpush1.msra.mxu0 0.0
        %444 = vmatprep.mubr.f32.mxu0 0.0
        %445 = vmatmul.mubr.f32.gmra.mrb[0].mxu0 %v375
        %v446 = vpop.f32.mrb[0].mxu0
        %v447 = vadd.f32 0.0, %v446
        %v448 = vpop.f32.mrb[0].mxu0
        %449 = vmatprep.mubr.f32.mxu0 0.0
        %450 = vmatmul.mubr.f32.gmra.mrb[0].mxu0 %v378
        %v451 = vpop.f32.mrb[0].mxu0
        %v452 = vadd.f32 0.0, %v451
        %v453 = vpop.f32.mrb[0].mxu0
        %454 = vdwg.mxu0
        %v456 = vsel %vm258, %v353, 0
        %v459 = vsel %vm258, %v354, 0
        %461 = vmatprep.subr.mxu0 0.0
        %462 = vmatpush1.msra.mxu0 %v355
        %463 = vmatprep.subr.mxu0 0.0
        %464 = vmatpush1.msra.mxu0 %v356
        %465 = vmatprep.subr.mxu0 0.0
        %466 = vmatpush1.msra.mxu0 %v357
        %467 = vmatprep.subr.mxu0 0.0
        %468 = vmatpush1.msra.mxu0 %v358
        %469 = vmatprep.subr.mxu0 0.0
        %470 = vmatpush1.msra.mxu0 %v359
        %471 = vmatprep.subr.mxu0 0.0
        %472 = vmatpush1.msra.mxu0 %v360
        %473 = vmatprep.subr.mxu0 0.0
        %474 = vmatpush1.msra.mxu0 %v361
        %475 = vmatprep.subr.mxu0 0.0
        %476 = vmatpush1.msra.mxu0 %v362
        %477 = vmatprep.subr.mxu0 0.0
        %478 = vmatpush1.msra.mxu0 0.0
        %479 = vmatprep.subr.mxu0 0.0
        %480 = vmatpush1.msra.mxu0 0.0
        %481 = vmatprep.subr.mxu0 0.0
        %482 = vmatpush1.msra.mxu0 0.0
        %483 = vmatprep.subr.mxu0 0.0
        %484 = vmatpush1.msra.mxu0 0.0
        %485 = vmatprep.subr.mxu0 0.0
        %486 = vmatpush1.msra.mxu0 0.0
        %487 = vmatprep.subr.mxu0 0.0
        %488 = vmatpush1.msra.mxu0 0.0
        %489 = vmatprep.subr.mxu0 0.0
        %490 = vmatpush1.msra.mxu0 0.0
        %491 = vmatprep.subr.mxu0 0.0
        %492 = vmatpush1.msra.mxu0 0.0
        %493 = vmatprep.subr.mxu0 0.0
        %494 = vmatpush1.msra.mxu0 0.0
        %495 = vmatprep.subr.mxu0 0.0
        %496 = vmatpush1.msra.mxu0 0.0
        %497 = vmatprep.subr.mxu0 0.0
        %498 = vmatpush1.msra.mxu0 0.0
        %499 = vmatprep.subr.mxu0 0.0
        %500 = vmatpush1.msra.mxu0 0.0
        %501 = vmatprep.subr.mxu0 0.0
        %502 = vmatpush1.msra.mxu0 0.0
        %503 = vmatprep.subr.mxu0 0.0
        %504 = vmatpush1.msra.mxu0 0.0
        %505 = vmatprep.subr.mxu0 0.0
        %506 = vmatpush1.msra.mxu0 0.0
        %507 = vmatprep.subr.mxu0 0.0
        %508 = vmatpush1.msra.mxu0 0.0
        %509 = vmatprep.subr.mxu0 0.0
        %510 = vmatpush1.msra.mxu0 0.0
        %511 = vmatprep.subr.mxu0 0.0
        %512 = vmatpush1.msra.mxu0 0.0
        %513 = vmatprep.subr.mxu0 0.0
        %514 = vmatpush1.msra.mxu0 0.0
        %515 = vmatprep.subr.mxu0 0.0
        %516 = vmatpush1.msra.mxu0 0.0
        %517 = vmatprep.subr.mxu0 0.0
        %518 = vmatpush1.msra.mxu0 0.0
        %519 = vmatprep.subr.mxu0 0.0
        %520 = vmatpush1.msra.mxu0 0.0
        %521 = vmatprep.subr.mxu0 0.0
        %522 = vmatpush1.msra.mxu0 0.0
        %523 = vmatprep.subr.mxu0 0.0
        %524 = vmatpush1.msra.mxu0 0.0
        %525 = vmatprep.mubr.f32.mxu0 0.0
        %526 = vmatmul.mubr.f32.gmra.mrb[0].mxu0 %v456
        %v527 = vpop.f32.mrb[0].mxu0
        %v528 = vadd.f32 %v447, %v527
        %v529 = vpop.f32.mrb[0].mxu0
        %530 = vmatprep.mubr.f32.mxu0 0.0
        %531 = vmatmul.mubr.f32.gmra.mrb[0].mxu0 %v459
        %v532 = vpop.f32.mrb[0].mxu0
        %v533 = vadd.f32 %v452, %v532
        %v534 = vpop.f32.mrb[0].mxu0
        %535 = vdwg.mxu0
        %v536 = vld [vmem:[#allocation2 + $0x2] sm:$0xff]
        %v537 = vld [vmem:[#allocation2 + $0xa] sm:$0xff]
        %s538 = scalar_lea.vmem [#allocation6], 128
        %v539 = vld [vmem:[%s538] sm:$0xff]
        %v540 = vld [vmem:[%s538 + $0x8] sm:$0xff]
        %v541 = vld [vmem:[%s538 + $0x10] sm:$0xff]
        %v542 = vld [vmem:[%s538 + $0x18] sm:$0xff]
        %v543 = vld [vmem:[%s538 + $0x20] sm:$0xff]
        %v544 = vld [vmem:[%s538 + $0x28] sm:$0xff]
        %v545 = vld [vmem:[%s538 + $0x30] sm:$0xff]
        %v546 = vld [vmem:[%s538 + $0x38] sm:$0xff]
        %v548 = vsel %vm258, %v536, 0
        %v551 = vsel %vm258, %v537, 0
        %553 = vmatprep.subr.mxu0 0.0
        %554 = vmatpush1.msra.mxu0 %v539
        %555 = vmatprep.subr.mxu0 0.0
        %556 = vmatpush1.msra.mxu0 %v540
        %557 = vmatprep.subr.mxu0 0.0
        %558 = vmatpush1.msra.mxu0 %v541
        %559 = vmatprep.subr.mxu0 0.0
        %560 = vmatpush1.msra.mxu0 %v542
        %561 = vmatprep.subr.mxu0 0.0
        %562 = vmatpush1.msra.mxu0 %v543
        %563 = vmatprep.subr.mxu0 0.0
        %564 = vmatpush1.msra.mxu0 %v544
        %565 = vmatprep.subr.mxu0 0.0
        %566 = vmatpush1.msra.mxu0 %v545
        %567 = vmatprep.subr.mxu0 0.0
        %568 = vmatpush1.msra.mxu0 %v546
        %569 = vmatprep.subr.mxu0 0.0
        %570 = vmatpush1.msra.mxu0 0.0
        %571 = vmatprep.subr.mxu0 0.0
        %572 = vmatpush1.msra.mxu0 0.0
        %573 = vmatprep.subr.mxu0 0.0
        %574 = vmatpush1.msra.mxu0 0.0
        %575 = vmatprep.subr.mxu0 0.0
        %576 = vmatpush1.msra.mxu0 0.0
        %577 = vmatprep.subr.mxu0 0.0
        %578 = vmatpush1.msra.mxu0 0.0
        %579 = vmatprep.subr.mxu0 0.0
        %580 = vmatpush1.msra.mxu0 0.0
        %581 = vmatprep.subr.mxu0 0.0
        %582 = vmatpush1.msra.mxu0 0.0
        %583 = vmatprep.subr.mxu0 0.0
        %584 = vmatpush1.msra.mxu0 0.0
        %585 = vmatprep.subr.mxu0 0.0
        %586 = vmatpush1.msra.mxu0 0.0
        %587 = vmatprep.subr.mxu0 0.0
        %588 = vmatpush1.msra.mxu0 0.0
        %589 = vmatprep.subr.mxu0 0.0
        %590 = vmatpush1.msra.mxu0 0.0
        %591 = vmatprep.subr.mxu0 0.0
        %592 = vmatpush1.msra.mxu0 0.0
        %593 = vmatprep.subr.mxu0 0.0
        %594 = vmatpush1.msra.mxu0 0.0
        %595 = vmatprep.subr.mxu0 0.0
        %596 = vmatpush1.msra.mxu0 0.0
        %597 = vmatprep.subr.mxu0 0.0
        %598 = vmatpush1.msra.mxu0 0.0
        %599 = vmatprep.subr.mxu0 0.0
        %600 = vmatpush1.msra.mxu0 0.0
        %601 = vmatprep.subr.mxu0 0.0
        %602 = vmatpush1.msra.mxu0 0.0
        %603 = vmatprep.subr.mxu0 0.0
        %604 = vmatpush1.msra.mxu0 0.0
        %605 = vmatprep.subr.mxu0 0.0
        %606 = vmatpush1.msra.mxu0 0.0
        %607 = vmatprep.subr.mxu0 0.0
        %608 = vmatpush1.msra.mxu0 0.0
        %609 = vmatprep.subr.mxu0 0.0
        %610 = vmatpush1.msra.mxu0 0.0
        %611 = vmatprep.subr.mxu0 0.0
        %612 = vmatpush1.msra.mxu0 0.0
        %613 = vmatprep.subr.mxu0 0.0
        %614 = vmatpush1.msra.mxu0 0.0
        %615 = vmatprep.subr.mxu0 0.0
        %616 = vmatpush1.msra.mxu0 0.0
        %617 = vmatprep.mubr.f32.mxu0 0.0
        %618 = vmatmul.mubr.f32.gmra.mrb[0].mxu0 %v548
        %v619 = vpop.f32.mrb[0].mxu0
        %v620 = vadd.f32 0.0, %v619
        %v621 = vpop.f32.mrb[0].mxu0
        %622 = vmatprep.mubr.f32.mxu0 0.0
        %623 = vmatmul.mubr.f32.gmra.mrb[0].mxu0 %v551
        %v624 = vpop.f32.mrb[0].mxu0
        %v625 = vadd.f32 0.0, %v624
        %v626 = vpop.f32.mrb[0].mxu0
        %627 = vdwg.mxu0
        %v628 = vadd.f32 %v528, %v620
        %v629 = vadd.f32 %v533, %v625
        %v630 = vld [vmem:[%s3] sm:$0x1]
        %v632 = vlaneseq
        %v633 = vshrl.u32 %v632, 7
        %v634 = vsub.s32 0, %v633
        %v635 = vrot.slane %v630, %v634
        %v637 = vadd.f32 %v628, %v635
        %v638 = vadd.f32 %v629, %v635
        %v639 = vmax.f32 %v637, 0.0
        %v640 = vmax.f32 %v638, 0.0
        %641 = vst [vmem:[%s244] sm:$0xff] %v639
        %642 = vst [vmem:[%s244 + $0x8] sm:$0xff] %v640
        %s643 = sand.u32 %s119, 1
        %s644 = scalar_lea.sflag [#allocation5], %s643
        %s645 = sand.u32 %s119, 1
        %s646 = smul.addr %s645, 16
        %s647 = scalar_lea.vmem [#allocation9], %s646
        // Predicated region
        $region49: #{tpu_custom_call.1} parent=35 // pred_check
          %p648 = pneg %p129
        $region50: #{tpu_custom_call.1} parent=35 // pred_check_branch
          %650 = sbr.rel (%p648) target = $region52
        $region51: #{tpu_custom_call.1} parent=35 // pred_region
          %s652 = ssub.s32 256, 256
          %653 = vsyncadd %s644, %s652
          %s654 = smul.addr %s22, 2
          %s655 = smul.addr %s654, 128
          %s656 = scalar_lea.hbm %s4, %s655
          %s657 = sshll.u32 %s647, 4
          %s658 = int_to_ptr.vmem [resolvable:$true] %s657
          %663 = dma.vmem_to_hbm [thread:$0]  %s658, 256, %s656, %s644, 128, 128, 8
        $region52: #{tpu_custom_call.1} parent=35 // pred_fallthru
          _
      $region36: #{tpu_custom_call.1} parent=5 // pred_fallthru
        _
      %p664 = scmp.le.s32.totalorder 2, %s17
      // Predicated region
      $region53: #{tpu_custom_call.1} parent=5 // pred_check
        %p665 = pneg %p664
      $region54: #{tpu_custom_call.1} parent=5 // pred_check_branch
        %667 = sbr.rel (%p665) target = $region56
      $region55: #{tpu_custom_call.1} parent=5 // pred_region
        %s668 = ssub.s32 %s17, 2
        // Predicated region
        $region57: #{tpu_custom_call.1} parent=55 // pred_check
          %p669 = pneg %p135
        $region58: #{tpu_custom_call.1} parent=55 // pred_check_branch
          %671 = sbr.rel (%p669) target = $region60
        $region59: #{tpu_custom_call.1} parent=55 // pred_region
          %s672 = sand.u32 %s120, 1
          %s673 = scalar_lea.sflag [#allocation5], %s672
          %s674 = sand.u32 %s120, 1
          %s675 = smul.addr %s674, 16
          %s676 = scalar_lea.vmem [#allocation9], %s675
          %677 = dma.done %s673, 256
        $region60: #{tpu_custom_call.1} parent=55 // pred_fallthru
          _
      $region56: #{tpu_custom_call.1} parent=5 // pred_fallthru
        _
    $region6: #{tpu_custom_call.1} parent=1 // loop_footer
      %s21 = sadd.s32 1, %s17
    $region7: #{tpu_custom_call.1} parent=1 // loop_footer_branch
      %16 = sbr.rel target = $region3
    $region8: #{tpu_custom_call.1} parent=1 // loop_exit
      _
    %678 = vsyncpa [#allocation4], 1
    %s679 = scalar_lea.sflag [#allocation4], 1
    %680 = vsyncpa %s679, 1
    %681 = vsyncpa [#allocation7], 1
    %682 = vsyncpa [#allocation5], 1
    %s683 = scalar_lea.sflag [#allocation5], 1
    %684 = vsyncpa %s683, 1

</llo_original>
